<compile_context>
chip_gen: v7x
topology: tpu7x:2x2x1
jax: 0.10.0
libtpu: 0.0.40
codegen_flags: <defaults>
</compile_context>

<pallas_src>
import jax
import jax.numpy as jnp
from jax.experimental import pallas as pl
from jax.experimental.pallas import tpu as pltpu


def _round_up(v, m):
    return ((v + m - 1) // m) * m


def _hard_swish_jnp(x):
    # Pure-JAX fallback / fast path (XLA fuses this into one elementwise pass).
    return x * jnp.clip(x + 3.0, 0.0, 6.0) * (1.0 / 6.0)


def _hard_swish_kernel(x_ref, o_ref):
    # x_ref / o_ref: (tr, lane_cols) lane-dense tiles.
    x = x_ref[...]
    if jnp.issubdtype(x.dtype, jnp.floating):
        y = x * jnp.clip(x + 3.0, 0.0, 6.0) * (1.0 / 6.0)
    else:
        xf = x.astype(jnp.float32)
        y = xf * jnp.clip(xf + 3.0, 0.0, 6.0) * (1.0 / 6.0)
    o_ref[...] = y.astype(o_ref.dtype)


def hard_swish(x, *, min_pallas_bytes=256 * 1024):
    """JAX/Pallas equivalent of HardSwish.forward for any input shape/dtype."""
    n = x.size
    itemsize = jnp.dtype(x.dtype).itemsize

    # Small-input fast path: pallas_call fixed cost + wrapper plumbing dominate;
    # let XLA fuse the elementwise op instead.
    if n == 0 or n * itemsize < min_pallas_bytes:
        return _hard_swish_jnp(x)

    orig_shape = x.shape
    flat = x.reshape(-1)

    # Split off the <128-element remainder so the kernel slab needs NO padding
    # (and therefore no trailing slice). rem == 0 in the common case.
    rem = n % 128
    n_main = n - rem
    if n_main == 0:
        return _hard_swish_jnp(x)

    # Widest lane width (multiple of 128) that divides the prefix exactly.
    lane_cols = next(c for c in (512, 256, 128) if n_main % c == 0)
    rows = n_main // lane_cols
    main = flat[:n_main] if rem else flat
    x2d = main.reshape(rows, lane_cols)

    # Per-generation block sizing: ~2 MiB blocks are the v5e-safe ceiling under
    # default scoped VMEM; v7x (much faster HBM) benefits from ~4 MiB blocks,
    # so raise the scoped-VMEM limit explicitly there (well under 64 MiB).
    device_kind = jax.devices()[0].device_kind.lower()
    if "7" in device_kind:
        target_block_bytes = 4 * 1024 * 1024
        vmem_limit_bytes = 48 * 1024 * 1024
    else:
        target_block_bytes = 2 * 1024 * 1024
        vmem_limit_bytes = None
    block_rows = max(8, (target_block_bytes // (lane_cols * itemsize)) // 8 * 8)

    if rows <= 8:
        # Single tiny block: full-dim escape hatch of the (8,128) rule.
        tr = rows
    else:
        # At least 2 balanced, 8-aligned blocks (megacore sharding on v7x;
        # one extra ~0.35us grid step is noise on v5e/v6e).
        n_blocks = max(2, pl.cdiv(rows, block_rows))
        tr = min(block_rows, _round_up(pl.cdiv(rows, n_blocks), 8))
    grid = (pl.cdiv(rows, tr),)

    out2d = pl.pallas_call(
        _hard_swish_kernel,
        out_shape=jax.ShapeDtypeStruct((rows, lane_cols), x.dtype),
        grid_spec=pltpu.PrefetchScalarGridSpec(
            num_scalar_prefetch=0,
            grid=grid,
            # Full-width (lane-dense) blocks -> fully contiguous HBM DMAs.
            in_specs=[pl.BlockSpec((tr, lane_cols), lambda i: (i, 0))],
            out_specs=pl.BlockSpec((tr, lane_cols), lambda i: (i, 0)),
        ),
        compiler_params=pltpu.CompilerParams(
            dimension_semantics=("parallel",),
            vmem_limit_bytes=vmem_limit_bytes,
        ),
        cost_estimate=pl.CostEstimate(
            flops=4 * n_main,
            transcendentals=0,
            bytes_accessed=2 * n_main * itemsize,
        ),
    )(x2d)

    out_main = out2d.reshape(-1)
    if rem:
        tail = _hard_swish_jnp(flat[n_main:])
        out_flat = jnp.concatenate([out_main, tail])
    else:
        out_flat = out_main
    return out_flat.reshape(orig_shape)


if __name__ == "__main__":
    key = jax.random.PRNGKey(0)
    k1, k2 = jax.random.split(key)

    def ref_fn(v):
        # torch: x * clamp(relu(x + 3), max=6) / 6
        return v * jnp.minimum(jax.nn.relu(v + 3.0), 6.0) / 6.0

    # NCHW activation shape implied by the module's typical use.
    x = jax.random.normal(k1, (2, 4, 16, 16), dtype=jnp.float32) * 4.0

    # Force the Pallas path (the auto heuristic would route this tiny tensor
    # to the fused-jnp fast path).
    y = jax.block_until_ready(hard_swish(x, min_pallas_bytes=0))
    ref = ref_fn(x)
    assert y.shape == ref.shape and y.dtype == ref.dtype
    assert jnp.allclose(y, ref, atol=1e-6, rtol=1e-5)

    # Default (auto-dispatch) path on the same input: fused-jnp fast path.
    y_auto = jax.block_until_ready(hard_swish(x))
    assert jnp.allclose(y_auto, ref, atol=1e-6, rtol=1e-5)

    # Ragged case: flat size not a multiple of 128 -> kernel on the divisible
    # prefix (with a write-masked ragged final grid block) + jnp tail.
    x2 = jax.random.normal(k2, (3, 5, 7, 11), dtype=jnp.float32) * 4.0
    y2 = jax.block_until_ready(hard_swish(x2, min_pallas_bytes=0))
    assert y2.shape == x2.shape and y2.dtype == x2.dtype
    assert jnp.allclose(y2, ref_fn(x2), atol=1e-6, rtol=1e-5)

    print("KERNEL_OK")
</pallas_src>

<mosaic_0001>
module attributes {stable_mosaic.version = 11 : i64} {
  func.func @_hard_swish_kernel(%arg0: i32, %arg1: memref<4x512xf32, #tpu.memory_space<vmem>>, %arg2: memref<4x512xf32, #tpu.memory_space<vmem>>) attributes {dimension_semantics = [#tpu.dimension_semantics<parallel>], iteration_bounds = array<i64: 1>, scalar_prefetch = 0 : i64, scratch_operands = 0 : i64, tpu.core_type = #tpu.core_type<tc>, window_params = [{transform_indices = @transform_0, window_bounds = array<i64: 4, 512>}, {transform_indices = @transform_1, window_bounds = array<i64: 4, 512>}]} {
    %c0 = arith.constant 0 : index
    %c0_0 = arith.constant 0 : index
    %0 = vector.load %arg1[%c0, %c0_0] : memref<4x512xf32, #tpu.memory_space<vmem>>, vector<4x512xf32>
    %cst = arith.constant 3.000000e+00 : f32
    %1 = vector.broadcast %cst : f32 to vector<4x512xf32>
    %2 = arith.addf %0, %1 : vector<4x512xf32>
    %cst_1 = arith.constant 0.000000e+00 : f32
    %cst_2 = arith.constant 6.000000e+00 : f32
    %3 = vector.broadcast %cst_1 : f32 to vector<4x512xf32>
    %4 = arith.maximumf %3, %2 : vector<4x512xf32>
    %5 = vector.broadcast %cst_2 : f32 to vector<4x512xf32>
    %6 = arith.minimumf %5, %4 : vector<4x512xf32>
    %7 = arith.mulf %0, %6 : vector<4x512xf32>
    %cst_3 = arith.constant 0.166666672 : f32
    %8 = vector.broadcast %cst_3 : f32 to vector<4x512xf32>
    %9 = arith.mulf %7, %8 : vector<4x512xf32>
    %c0_4 = arith.constant 0 : index
    %c0_5 = arith.constant 0 : index
    %10 = vector.load %arg2[%c0_4, %c0_5] : memref<4x512xf32, #tpu.memory_space<vmem>>, vector<4x512xf32>
    tpu.vector_store %arg2[%c0_4, %c0_5], %9 {strides = array<i32>} : memref<4x512xf32, #tpu.memory_space<vmem>>, vector<4x512xf32>,
    return
  }
  func.func @transform_0(%arg0: i32) -> (i32, i32) {
    %c0_i32 = arith.constant 0 : i32
    %c0_i32_0 = arith.constant 0 : i32
    return %arg0, %c0_i32 : i32, i32
  }
  func.func @transform_1(%arg0: i32) -> (i32, i32) {
    %c0_i32 = arith.constant 0 : i32
    %c0_i32_0 = arith.constant 0 : i32
    return %arg0, %c0_i32 : i32, i32
  }
}

</mosaic_0001>

<llo_original>
// kernel: tpu_custom_call.1
$region0: #{tpu_custom_call.1}
  #allocation0 [shape = 'u32[]', space=smem, size = 0x4, offset = 0x4, fixed_abs, tag = 'smem constant byte address 0x4 - core index']
  #allocation1 [shape = 'u32[144,128]{1,0:T(1,128)}', space=vmem, size = 0x12000, scoped, tag = 'internal scratch']
  %s0 = inlined_call_operand.hbm [shape: f32[4,512], index: 0, kind: input, shape index: {}]
  %s1 = inlined_call_operand.hbm [shape: f32[4,512], index: 1, kind: output, shape index: {}]
  %s2 = sld [smem:[#allocation0]]
  $region18: #{tpu_custom_call.1} parent=0
    _
  %s4 = ssub.s32 1, %s2
  %s5 = scalar_select 0, %s4, %s2
  $region1: #{tpu_custom_call.1} parent=0
    #allocation2 [shape = 'u8[8192]{0}', space=vmem, size = 0x2000, scoped, tag = 'input window, operand 0, single buffered']
    #allocation3 [shape = 's32[1]{0}', space=sflag, size = 0x4, scoped, tag = 'scoped memory for tpu_custom_call.1']
    #allocation4 [shape = 's32[1]{0}', space=sflag, size = 0x4, scoped, tag = 'scoped memory for tpu_custom_call.1']
    #allocation5 [shape = 'u8[8192]{0}', space=vmem, size = 0x2000, scoped, tag = 'output window, operand 0, single buffered']
    %6 = vsyncpa [#allocation3], 0
    %7 = vsyncpa [#allocation4], 0
    // Predicated region
    $region2: #{tpu_custom_call.1} parent=1 // pred_check
      _
    $region3: #{tpu_custom_call.1} parent=1 // pred_check_branch
      %9 = sbr.rel (0) target = $region5
    $region4: #{tpu_custom_call.1} parent=1 // pred_region
      %s11 = ssub.s32 256, 256
      %12 = vsyncadd [#allocation3], %s11
      %s14 = sshll.u32 [#allocation2], 4
      %s15 = int_to_ptr.vmem [resolvable:$true] %s14
      %17 = dma.hbm_to_vmem [thread:$0]  %s0, 256, %s15, [#allocation3]
    $region5: #{tpu_custom_call.1} parent=1 // pred_fallthru
      _
    // Predicated region
    $region6: #{tpu_custom_call.1} parent=1 // pred_check
      _
    $region7: #{tpu_custom_call.1} parent=1 // pred_check_branch
      %19 = sbr.rel (0) target = $region9
    $region8: #{tpu_custom_call.1} parent=1 // pred_region
      %20 = dma.done [#allocation3], 256
    $region9: #{tpu_custom_call.1} parent=1 // pred_fallthru
      _
    %v21 = vld [vmem:[#allocation2] sm:$0xff]
    %v22 = vld [vmem:[#allocation2 + $0x8] sm:$0xff]
    %v23 = vadd.f32 %v21, 3.0
    %v24 = vadd.f32 %v22, 3.0
    %v25 = vmax.f32 %v23, 0.0
    %v26 = vmax.f32 %v24, 0.0
    %v27 = vmin.f32 %v25, 6.0
    %v28 = vmin.f32 %v26, 6.0
    %v29 = vmul.f32 %v21, %v27
    %v30 = vmul.f32 %v22, %v28
    %v31 = vmul.f32 %v29, 0.16666667
    %v32 = vmul.f32 %v30, 0.16666667
    %33 = vst [vmem:[#allocation5] sm:$0xff] %v31
    %34 = vst [vmem:[#allocation5 + $0x8] sm:$0xff] %v32
    // Predicated region
    $region10: #{tpu_custom_call.1} parent=1 // pred_check
      _
    $region11: #{tpu_custom_call.1} parent=1 // pred_check_branch
      %36 = sbr.rel (0) target = $region13
    $region12: #{tpu_custom_call.1} parent=1 // pred_region
      %s38 = ssub.s32 256, 256
      %39 = vsyncadd [#allocation4], %s38
      %s41 = sshll.u32 [#allocation5], 4
      %s42 = int_to_ptr.vmem [resolvable:$true] %s41
      %44 = dma.vmem_to_hbm [thread:$0]  %s42, 256, %s1, [#allocation4]
    $region13: #{tpu_custom_call.1} parent=1 // pred_fallthru
      _
    // Predicated region
    $region14: #{tpu_custom_call.1} parent=1 // pred_check
      _
    $region15: #{tpu_custom_call.1} parent=1 // pred_check_branch
      %46 = sbr.rel (0) target = $region17
    $region16: #{tpu_custom_call.1} parent=1 // pred_region
      %47 = dma.done [#allocation4], 256
    $region17: #{tpu_custom_call.1} parent=1 // pred_fallthru
      _
    %48 = vsyncpa [#allocation3], 1
    %49 = vsyncpa [#allocation4], 1

</llo_original>
